<compile_context>
chip_gen: v7x
topology: tpu7x:2x2x1
jax: 0.10.0
libtpu: 0.0.40
codegen_flags: <defaults>
</compile_context>

<pallas_src>
import functools

import jax
import jax.numpy as jnp
from jax.experimental import pallas as pl
from jax.experimental.pallas import tpu as pltpu


# --------------------------------------------------------------------------
# Kernel bodies
# --------------------------------------------------------------------------
def _prework_bf16(lhs_refs):
    """Fused SplitScale + AddPair prework, fed to the MXU as bf16.

    aliased path (1 ref):  x      -> 3*x      (1 + 2, since a is b — single HBM stream)
    generic path (2 refs): (a, b) -> a + 2*b
    Done in f32 on the VPU (v5e has no bf16 VALU), single cast for the MXU feed.
    """
    if len(lhs_refs) == 1:
        xs = 3.0 * lhs_refs[0][...]
    else:
        xs = lhs_refs[0][...] + 2.0 * lhs_refs[1][...]
    return xs.astype(jnp.bfloat16)


def _single_block_kernel(*refs, n_lhs):
    # Whole problem resident in VMEM: no grid, no accumulator scratch, no pl.when.
    lhs_refs = refs[:n_lhs]
    w_ref, bias_ref, o_ref = refs[n_lhs:]
    acc = jnp.dot(_prework_bf16(lhs_refs), w_ref[...],
                  preferred_element_type=jnp.float32)
    o_ref[...] = jnp.maximum(acc + bias_ref[...], 0.0).astype(o_ref.dtype)


def _tiled_kernel(*refs, n_lhs):
    # P1 + P3: (M/tm, N/tn, K/tk) grid, f32 accumulator, K last ("arbitrary").
    lhs_refs = refs[:n_lhs]
    w_ref, bias_ref, o_ref, acc_ref = refs[n_lhs:]
    k = pl.program_id(2)

    @pl.when(k == 0)
    def _():
        # Fold the bias into the accumulator init (saves a tm x tn VALU pass on
        # the last / critical K step).
        acc_ref[...] = jnp.broadcast_to(
            bias_ref[...].astype(jnp.float32), acc_ref.shape)

    acc_ref[...] += jnp.dot(_prework_bf16(lhs_refs), w_ref[...],
                            preferred_element_type=jnp.float32)

    @pl.when(k == pl.num_programs(2) - 1)
    def _():
        o_ref[...] = jnp.maximum(acc_ref[...], 0.0).astype(o_ref.dtype)


def _pick_tile(dim, candidates):
    for c in candidates:
        if c <= dim and dim % c == 0:
            return c
    return dim  # fall back to the full dimension (always divides evenly)


# --------------------------------------------------------------------------
# Sub-modules
# --------------------------------------------------------------------------
class SplitNoCopy:
    """x -> (x, x). Exercises the container's tuple path with zero data movement;
    the original SplitScale's *2 factor is folded into the fused consumer."""

    def __call__(self, x):
        return (x, x)


class FusedAddLinearReLU:
    """(a, b) -> relu((a + 2*b) @ W + bias) in one pallas_call.

    If `a is b` (the SplitNoCopy output) the kernel streams a single lhs operand
    and computes 3*a, halving activation DMA traffic.
    """

    def __init__(self, in_features, out_features, key, *,
                 vmem_budget_bytes=16 * 1024 * 1024, force_tiled=False):
        kw, kb = jax.random.split(key)
        # Deterministic synthetic parameters; W stored bf16 to feed the MXU directly.
        self.w = (
            jax.random.normal(kw, (in_features, out_features), jnp.float32) * 0.1
        ).astype(jnp.bfloat16)
        self.b = jax.random.normal(kb, (1, out_features), jnp.float32) * 0.1
        self.vmem_budget_bytes = vmem_budget_bytes
        self.force_tiled = force_tiled

    def __call__(self, inputs):
        a, b = inputs
        aliased = a is b
        lhs = (a,) if aliased else (a, b)
        n_lhs = len(lhs)

        M, K = a.shape
        N = self.w.shape[1]
        out_shape = jax.ShapeDtypeStruct((M, N), a.dtype)

        cost = pl.CostEstimate(
            flops=2 * M * N * K + 3 * M * K + 2 * M * N,
            transcendentals=0,
            bytes_accessed=n_lhs * M * K * 4 + K * N * 2 + N * 4 + M * N * 4,
        )

        # Single-block working-set estimate (everything resident once, no double buffer).
        work_bytes = (n_lhs * M * K * 4      # f32 lhs activation(s)
                      + M * K * 2            # bf16 prework intermediate
                      + K * N * 2            # bf16 weights
                      + N * 4                # bias
                      + 2 * M * N * 4)       # f32 matmul result + output block

        if not self.force_tiled and work_bytes <= self.vmem_budget_bytes:
            # ---- Single-block path: no grid, one MXU burst, fused epilogue. ----
            # TODO(synk): on v7x this tiny-problem path runs on one TensorCore only;
            # sharding it would cost more in sync than it saves.
            in_specs = (
                [pl.BlockSpec((M, K), lambda: (0, 0))] * n_lhs
                + [pl.BlockSpec((K, N), lambda: (0, 0)),
                   pl.BlockSpec((1, N), lambda: (0, 0))]
            )
            return pl.pallas_call(
                functools.partial(_single_block_kernel, n_lhs=n_lhs),
                out_shape=out_shape,
                in_specs=in_specs,
                out_specs=pl.BlockSpec((M, N), lambda: (0, 0)),
                compiler_params=pltpu.CompilerParams(
                    vmem_limit_bytes=32 * 1024 * 1024),
                cost_estimate=cost,
            )(*lhs, self.w, self.b)

        # ---- Tiled path (large shapes): MXU-filling tiles, K-reduction last. ----
        tm = _pick_tile(M, (256, 128, 64, 32, 16, 8))
        tn = _pick_tile(N, (512, 256, 128))          # >=256 fills v6e/v7x MXU; 128-mult ok on v5e
        tk = K if K <= 1024 else _pick_tile(K, (512, 256, 128))  # tk=K kills the K grid axis when it fits
        grid = (M // tm, N // tn, K // tk)           # reduction (K) last

        lhs_spec = pl.BlockSpec((tm, tk), lambda i, j, k: (i, k))
        in_specs = [lhs_spec] * n_lhs + [
            pl.BlockSpec((tk, tn), lambda i, j, k: (k, j)),   # W
            pl.BlockSpec((1, tn), lambda i, j, k: (0, j)),    # bias
        ]
        return pl.pallas_call(
            functools.partial(_tiled_kernel, n_lhs=n_lhs),
            out_shape=out_shape,
            grid_spec=pltpu.PrefetchScalarGridSpec(
                num_scalar_prefetch=0,
                grid=grid,
                in_specs=in_specs,
                out_specs=pl.BlockSpec((tm, tn), lambda i, j, k: (i, j)),
                scratch_shapes=[pltpu.VMEM((tm, tn), jnp.float32)],
            ),
            compiler_params=pltpu.CompilerParams(
                # M, N parallel (megacore / 2 TCs on v7x); K is the reduction.
                dimension_semantics=("parallel", "parallel", "arbitrary"),
                vmem_limit_bytes=32 * 1024 * 1024,   # safe on v5e/v6e/v7x for these tiles
            ),
            cost_estimate=cost,
        )(*lhs, self.w, self.b)


# --------------------------------------------------------------------------
# The container — semantics copied verbatim from the PyTorch forward()
# --------------------------------------------------------------------------
class MultiInputSequential:
    def __init__(self, *modules):
        self.modules = modules

    def __call__(self, *inputs):
        for module in self.modules:
            if type(inputs) == tuple:
                if len(inputs) == 1:
                    inputs = module(inputs[0])
                else:
                    inputs = module(inputs)
            else:
                inputs = module(inputs)
        return inputs


# --------------------------------------------------------------------------
# Driver
# --------------------------------------------------------------------------
if __name__ == "__main__":
    key = jax.random.PRNGKey(0)
    kx, kp = jax.random.split(key)

    # Lane-dense small shapes: feature dims are multiples of 128.
    batch, d_in, d_out = 128, 256, 256
    x = jax.random.normal(kx, (batch, d_in), jnp.float32)

    fused = FusedAddLinearReLU(d_in, d_out, kp)
    model = MultiInputSequential(SplitNoCopy(), fused)

    # jit the whole forward so the single custom call is scheduled on-device.
    fwd = jax.jit(lambda inp: model(inp))
    out = jax.block_until_ready(fwd(x))

    # Pure-JAX reference of the fused chain (same bf16 feed, f32 accumulation).
    ref = jnp.maximum(
        jnp.dot((3.0 * x).astype(jnp.bfloat16), fused.w,
                preferred_element_type=jnp.float32) + fused.b, 0.0
    ).astype(out.dtype)

    assert out.shape == (batch, d_out)
    assert jnp.allclose(out, ref, atol=2e-2, rtol=2e-2)

    # Also exercise the tiled (K-reduction) fallback path with identical params.
    fused_tiled = FusedAddLinearReLU(d_in, d_out, kp, force_tiled=True)
    model_tiled = MultiInputSequential(SplitNoCopy(), fused_tiled)
    out_tiled = jax.block_until_ready(jax.jit(lambda inp: model_tiled(inp))(x))
    assert jnp.allclose(out_tiled, ref, atol=2e-2, rtol=2e-2)

    # And the generic (non-aliased) two-input path of the fused module.
    b2 = 0.5 * x
    out_pair = jax.block_until_ready(jax.jit(lambda u, v: fused((u, v)))(x, b2))
    ref_pair = jnp.maximum(
        jnp.dot((x + 2.0 * b2).astype(jnp.bfloat16), fused.w,
                preferred_element_type=jnp.float32) + fused.b, 0.0
    ).astype(out_pair.dtype)
    assert jnp.allclose(out_pair, ref_pair, atol=2e-2, rtol=2e-2)

    print("KERNEL_OK")
</pallas_src>

<mosaic_0001>
module attributes {stable_mosaic.version = 11 : i64} {
  func.func @_single_block_kernel(%arg0: memref<128x256xf32, #tpu.memory_space<vmem>>, %arg1: memref<256x256xbf16, #tpu.memory_space<vmem>>, %arg2: memref<1x256xf32, #tpu.memory_space<vmem>>, %arg3: memref<128x256xf32, #tpu.memory_space<vmem>>) attributes {dimension_semantics = [], scalar_prefetch = 0 : i64, scratch_operands = 0 : i64, tpu.core_type = #tpu.core_type<tc>} {
    %c0 = arith.constant 0 : index
    %c0_0 = arith.constant 0 : index
    %0 = vector.load %arg0[%c0, %c0_0] : memref<128x256xf32, #tpu.memory_space<vmem>>, vector<128x256xf32>
    %cst = arith.constant 3.000000e+00 : f32
    %1 = vector.broadcast %cst : f32 to vector<128x256xf32>
    %2 = arith.mulf %1, %0 : vector<128x256xf32>
    %3 = arith.truncf %2 : vector<128x256xf32> to vector<128x256xbf16>
    %c0_1 = arith.constant 0 : index
    %c0_2 = arith.constant 0 : index
    %4 = vector.load %arg1[%c0_1, %c0_2] : memref<256x256xbf16, #tpu.memory_space<vmem>>, vector<256x256xbf16>
    %cst_3 = arith.constant dense<0.000000e+00> : vector<128x256xf32>
    %5 = tpu.matmul %3, %4, %cst_3 {dimension_numbers = #tpu.dot_dimension_numbers<[1], [0], [0], [1], [0, 0, 1, 1], [], []>} : vector<128x256xbf16>, vector<256x256xbf16>, vector<128x256xf32> -> vector<128x256xf32>
    %c0_4 = arith.constant 0 : index
    %c0_5 = arith.constant 0 : index
    %6 = vector.load %arg2[%c0_4, %c0_5] : memref<1x256xf32, #tpu.memory_space<vmem>>, vector<1x256xf32>
    %7 = vector.broadcast %6 : vector<1x256xf32> to vector<128x256xf32>
    %8 = arith.addf %5, %7 : vector<128x256xf32>
    %cst_6 = arith.constant 0.000000e+00 : f32
    %9 = vector.broadcast %cst_6 : f32 to vector<128x256xf32>
    %10 = arith.maximumf %8, %9 : vector<128x256xf32>
    %c0_7 = arith.constant 0 : index
    %c0_8 = arith.constant 0 : index
    %11 = vector.load %arg3[%c0_7, %c0_8] : memref<128x256xf32, #tpu.memory_space<vmem>>, vector<128x256xf32>
    tpu.vector_store %arg3[%c0_7, %c0_8], %10 {strides = array<i32>} : memref<128x256xf32, #tpu.memory_space<vmem>>, vector<128x256xf32>,
    return
  }
}

</mosaic_0001>

<llo_original>
// kernel: _lambda_.1
$region0: #{_lambda_.1}
  #allocation0 [shape = 'u32[]', space=smem, size = 0x4, offset = 0x4, fixed_abs, tag = 'smem constant byte address 0x4 - core index']
  #allocation1 [shape = 'u32[144,128]{1,0:T(1,128)}', space=vmem, size = 0x12000, scoped, tag = 'internal scratch']
  %s0 = inlined_call_operand.vmem [shape: f32[128,256], index: 0, kind: input, shape index: {}]
  %s1 = inlined_call_operand.vmem [shape: bf16[256,256], index: 1, kind: input, shape index: {}]
  %s2 = inlined_call_operand.vmem [shape: f32[1,256], index: 2, kind: input, shape index: {}]
  %s3 = inlined_call_operand.hbm [shape: f32[128,256], index: 3, kind: output, shape index: {}]
  %s4 = sld [smem:[#allocation0]]
  $region22: #{_lambda_.1} parent=0
    _
  %s6 = ssub.s32 1, %s4
  %s7 = scalar_select 0, %s6, %s4
  $region1: #{_lambda_.1} parent=0
    #allocation2 [shape = 'u8[131072]{0}', space=vmem, size = 0x20000, scoped, tag = 'output window, operand 0, single buffered']
    #allocation3 [shape = 's32[1]{0}', space=sflag, size = 0x4, scoped, tag = 'scoped memory for _lambda_.1']
    %8 = vsyncpa [#allocation3], 0
    // Predicated region
    $region2: #{_lambda_.1} parent=1 // pred_check
      _
    $region3: #{_lambda_.1} parent=1 // pred_check_branch
      %10 = sbr.rel (0) target = $region5
    $region4: #{_lambda_.1} parent=1 // pred_region
      _
    $region5: #{_lambda_.1} parent=1 // pred_fallthru
      _
    // Predicated region
    $region6: #{_lambda_.1} parent=1 // pred_check
      _
    $region7: #{_lambda_.1} parent=1 // pred_check_branch
      %12 = sbr.rel (0) target = $region9
    $region8: #{_lambda_.1} parent=1 // pred_region
      _
    $region9: #{_lambda_.1} parent=1 // pred_fallthru
      _
    // Predicated region
    $region10: #{_lambda_.1} parent=1 // pred_check
      _
    $region11: #{_lambda_.1} parent=1 // pred_check_branch
      %14 = sbr.rel (0) target = $region13
    $region12: #{_lambda_.1} parent=1 // pred_region
      _
    $region13: #{_lambda_.1} parent=1 // pred_fallthru
      _
    %v15 = vld [vmem:[%s0] sm:$0xff]
    %v16 = vld [vmem:[%s0 + $0x8] sm:$0xff]
    %v17 = vld [vmem:[%s0 + $0x10] sm:$0xff]
    %v18 = vld [vmem:[%s0 + $0x18] sm:$0xff]
    %v19 = vld [vmem:[%s0 + $0x20] sm:$0xff]
    %v20 = vld [vmem:[%s0 + $0x28] sm:$0xff]
    %v21 = vld [vmem:[%s0 + $0x30] sm:$0xff]
    %v22 = vld [vmem:[%s0 + $0x38] sm:$0xff]
    %v23 = vld [vmem:[%s0 + $0x40] sm:$0xff]
    %v24 = vld [vmem:[%s0 + $0x48] sm:$0xff]
    %v25 = vld [vmem:[%s0 + $0x50] sm:$0xff]
    %v26 = vld [vmem:[%s0 + $0x58] sm:$0xff]
    %v27 = vld [vmem:[%s0 + $0x60] sm:$0xff]
    %v28 = vld [vmem:[%s0 + $0x68] sm:$0xff]
    %v29 = vld [vmem:[%s0 + $0x70] sm:$0xff]
    %v30 = vld [vmem:[%s0 + $0x78] sm:$0xff]
    %v31 = vld [vmem:[%s0 + $0x80] sm:$0xff]
    %v32 = vld [vmem:[%s0 + $0x88] sm:$0xff]
    %v33 = vld [vmem:[%s0 + $0x90] sm:$0xff]
    %v34 = vld [vmem:[%s0 + $0x98] sm:$0xff]
    %v35 = vld [vmem:[%s0 + $0xa0] sm:$0xff]
    %v36 = vld [vmem:[%s0 + $0xa8] sm:$0xff]
    %v37 = vld [vmem:[%s0 + $0xb0] sm:$0xff]
    %v38 = vld [vmem:[%s0 + $0xb8] sm:$0xff]
    %v39 = vld [vmem:[%s0 + $0xc0] sm:$0xff]
    %v40 = vld [vmem:[%s0 + $0xc8] sm:$0xff]
    %v41 = vld [vmem:[%s0 + $0xd0] sm:$0xff]
    %v42 = vld [vmem:[%s0 + $0xd8] sm:$0xff]
    %v43 = vld [vmem:[%s0 + $0xe0] sm:$0xff]
    %v44 = vld [vmem:[%s0 + $0xe8] sm:$0xff]
    %v45 = vld [vmem:[%s0 + $0xf0] sm:$0xff]
    %v46 = vld [vmem:[%s0 + $0xf8] sm:$0xff]
    %v47 = vmul.f32 %v15, 3.0
    %v48 = vmul.f32 %v16, 3.0
    %v49 = vmul.f32 %v17, 3.0
    %v50 = vmul.f32 %v18, 3.0
    %v51 = vmul.f32 %v19, 3.0
    %v52 = vmul.f32 %v20, 3.0
    %v53 = vmul.f32 %v21, 3.0
    %v54 = vmul.f32 %v22, 3.0
    %v55 = vmul.f32 %v23, 3.0
    %v56 = vmul.f32 %v24, 3.0
    %v57 = vmul.f32 %v25, 3.0
    %v58 = vmul.f32 %v26, 3.0
    %v59 = vmul.f32 %v27, 3.0
    %v60 = vmul.f32 %v28, 3.0
    %v61 = vmul.f32 %v29, 3.0
    %v62 = vmul.f32 %v30, 3.0
    %v63 = vmul.f32 %v31, 3.0
    %v64 = vmul.f32 %v32, 3.0
    %v65 = vmul.f32 %v33, 3.0
    %v66 = vmul.f32 %v34, 3.0
    %v67 = vmul.f32 %v35, 3.0
    %v68 = vmul.f32 %v36, 3.0
    %v69 = vmul.f32 %v37, 3.0
    %v70 = vmul.f32 %v38, 3.0
    %v71 = vmul.f32 %v39, 3.0
    %v72 = vmul.f32 %v40, 3.0
    %v73 = vmul.f32 %v41, 3.0
    %v74 = vmul.f32 %v42, 3.0
    %v75 = vmul.f32 %v43, 3.0
    %v76 = vmul.f32 %v44, 3.0
    %v77 = vmul.f32 %v45, 3.0
    %v78 = vmul.f32 %v46, 3.0
    %v79 = vpack.c.bf16 %v49, %v47
    %v80 = vpack.c.bf16 %v50, %v48
    %v81 = vpack.c.bf16 %v53, %v51
    %v82 = vpack.c.bf16 %v54, %v52
    %v83 = vpack.c.bf16 %v57, %v55
    %v84 = vpack.c.bf16 %v58, %v56
    %v85 = vpack.c.bf16 %v61, %v59
    %v86 = vpack.c.bf16 %v62, %v60
    %v87 = vpack.c.bf16 %v65, %v63
    %v88 = vpack.c.bf16 %v66, %v64
    %v89 = vpack.c.bf16 %v69, %v67
    %v90 = vpack.c.bf16 %v70, %v68
    %v91 = vpack.c.bf16 %v73, %v71
    %v92 = vpack.c.bf16 %v74, %v72
    %v93 = vpack.c.bf16 %v77, %v75
    %v94 = vpack.c.bf16 %v78, %v76
    %v95 = vld [vmem:[%s1] sm:$0xff]
    %v96 = vld [vmem:[%s1 + $0x8] sm:$0xff]
    %v97 = vld [vmem:[%s1 + $0x10] sm:$0xff]
    %v98 = vld [vmem:[%s1 + $0x18] sm:$0xff]
    %v99 = vld [vmem:[%s1 + $0x20] sm:$0xff]
    %v100 = vld [vmem:[%s1 + $0x28] sm:$0xff]
    %v101 = vld [vmem:[%s1 + $0x30] sm:$0xff]
    %v102 = vld [vmem:[%s1 + $0x38] sm:$0xff]
    %v103 = vld [vmem:[%s1 + $0x40] sm:$0xff]
    %v104 = vld [vmem:[%s1 + $0x48] sm:$0xff]
    %v105 = vld [vmem:[%s1 + $0x50] sm:$0xff]
    %v106 = vld [vmem:[%s1 + $0x58] sm:$0xff]
    %v107 = vld [vmem:[%s1 + $0x60] sm:$0xff]
    %v108 = vld [vmem:[%s1 + $0x68] sm:$0xff]
    %v109 = vld [vmem:[%s1 + $0x70] sm:$0xff]
    %v110 = vld [vmem:[%s1 + $0x78] sm:$0xff]
    %v111 = vld [vmem:[%s1 + $0x80] sm:$0xff]
    %v112 = vld [vmem:[%s1 + $0x88] sm:$0xff]
    %v113 = vld [vmem:[%s1 + $0x90] sm:$0xff]
    %v114 = vld [vmem:[%s1 + $0x98] sm:$0xff]
    %v115 = vld [vmem:[%s1 + $0xa0] sm:$0xff]
    %v116 = vld [vmem:[%s1 + $0xa8] sm:$0xff]
    %v117 = vld [vmem:[%s1 + $0xb0] sm:$0xff]
    %v118 = vld [vmem:[%s1 + $0xb8] sm:$0xff]
    %v119 = vld [vmem:[%s1 + $0xc0] sm:$0xff]
    %v120 = vld [vmem:[%s1 + $0xc8] sm:$0xff]
    %v121 = vld [vmem:[%s1 + $0xd0] sm:$0xff]
    %v122 = vld [vmem:[%s1 + $0xd8] sm:$0xff]
    %v123 = vld [vmem:[%s1 + $0xe0] sm:$0xff]
    %v124 = vld [vmem:[%s1 + $0xe8] sm:$0xff]
    %v125 = vld [vmem:[%s1 + $0xf0] sm:$0xff]
    %v126 = vld [vmem:[%s1 + $0xf8] sm:$0xff]
    %v127 = vld [vmem:[%s2] sm:$0x3]
    %v129 = vlaneseq
    %v130 = vshrl.u32 %v129, 7
    %v131 = vsub.s32 0, %v130
    %v132 = vrot.slane %v127, %v131
    %v133 = vlaneseq
    %v134 = vshrl.u32 %v133, 7
    %v135 = vsub.s32 1, %v134
    %v136 = vrot.slane %v127, %v135
    %v171 = vunpack.c.l.b16 %v95
    %v172 = vunpack.c.h.b16 %v95
    %v173 = vunpack.c.l.b16 %v96
    %v174 = vunpack.c.h.b16 %v96
    %v175 = vunpack.c.l.b16 %v97
    %v176 = vunpack.c.h.b16 %v97
    %v177 = vunpack.c.l.b16 %v98
    %v178 = vunpack.c.h.b16 %v98
    %v179 = vunpack.c.l.b16 %v99
    %v180 = vunpack.c.h.b16 %v99
    %v181 = vunpack.c.l.b16 %v100
    %v182 = vunpack.c.h.b16 %v100
    %v183 = vunpack.c.l.b16 %v101
    %v184 = vunpack.c.h.b16 %v101
    %v185 = vunpack.c.l.b16 %v102
    %v186 = vunpack.c.h.b16 %v102
    %v187 = vunpack.c.l.b16 %v103
    %v188 = vunpack.c.h.b16 %v103
    %v189 = vunpack.c.l.b16 %v104
    %v190 = vunpack.c.h.b16 %v104
    %v191 = vunpack.c.l.b16 %v105
    %v192 = vunpack.c.h.b16 %v105
    %v193 = vunpack.c.l.b16 %v106
    %v194 = vunpack.c.h.b16 %v106
    %v195 = vunpack.c.l.b16 %v107
    %v196 = vunpack.c.h.b16 %v107
    %v197 = vunpack.c.l.b16 %v108
    %v198 = vunpack.c.h.b16 %v108
    %v199 = vunpack.c.l.b16 %v109
    %v200 = vunpack.c.h.b16 %v109
    %v201 = vunpack.c.l.b16 %v110
    %v202 = vunpack.c.h.b16 %v110
    %v203 = vunpack.c.l.b16 %v111
    %v204 = vunpack.c.h.b16 %v111
    %v205 = vunpack.c.l.b16 %v112
    %v206 = vunpack.c.h.b16 %v112
    %v207 = vunpack.c.l.b16 %v113
    %v208 = vunpack.c.h.b16 %v113
    %v209 = vunpack.c.l.b16 %v114
    %v210 = vunpack.c.h.b16 %v114
    %v211 = vunpack.c.l.b16 %v115
    %v212 = vunpack.c.h.b16 %v115
    %v213 = vunpack.c.l.b16 %v116
    %v214 = vunpack.c.h.b16 %v116
    %v215 = vunpack.c.l.b16 %v117
    %v216 = vunpack.c.h.b16 %v117
    %v217 = vunpack.c.l.b16 %v118
    %v218 = vunpack.c.h.b16 %v118
    %v219 = vunpack.c.l.b16 %v119
    %v220 = vunpack.c.h.b16 %v119
    %v221 = vunpack.c.l.b16 %v120
    %v222 = vunpack.c.h.b16 %v120
    %v223 = vunpack.c.l.b16 %v121
    %v224 = vunpack.c.h.b16 %v121
    %v225 = vunpack.c.l.b16 %v122
    %v226 = vunpack.c.h.b16 %v122
    %v227 = vunpack.c.l.b16 %v123
    %v228 = vunpack.c.h.b16 %v123
    %v229 = vunpack.c.l.b16 %v124
    %v230 = vunpack.c.h.b16 %v124
    %v231 = vunpack.c.l.b16 %v125
    %v232 = vunpack.c.h.b16 %v125
    %v233 = vunpack.c.l.b16 %v126
    %v234 = vunpack.c.h.b16 %v126
    %v235 = vpack.c.b16 %v173, %v171
    %v236 = vpack.c.b16 %v174, %v172
    %v237 = vpack.c.b16 %v177, %v175
    %v238 = vpack.c.b16 %v178, %v176
    %v239 = vpack.c.b16 %v181, %v179
    %v240 = vpack.c.b16 %v182, %v180
    %v241 = vpack.c.b16 %v185, %v183
    %v242 = vpack.c.b16 %v186, %v184
    %v243 = vpack.c.b16 %v189, %v187
    %v244 = vpack.c.b16 %v190, %v188
    %v245 = vpack.c.b16 %v193, %v191
    %v246 = vpack.c.b16 %v194, %v192
    %v247 = vpack.c.b16 %v197, %v195
    %v248 = vpack.c.b16 %v198, %v196
    %v249 = vpack.c.b16 %v201, %v199
    %v250 = vpack.c.b16 %v202, %v200
    %v251 = vpack.c.b16 %v205, %v203
    %v252 = vpack.c.b16 %v206, %v204
    %v253 = vpack.c.b16 %v209, %v207
    %v254 = vpack.c.b16 %v210, %v208
    %v255 = vpack.c.b16 %v213, %v211
    %v256 = vpack.c.b16 %v214, %v212
    %v257 = vpack.c.b16 %v217, %v215
    %v258 = vpack.c.b16 %v218, %v216
    %v259 = vpack.c.b16 %v221, %v219
    %v260 = vpack.c.b16 %v222, %v220
    %v261 = vpack.c.b16 %v225, %v223
    %v262 = vpack.c.b16 %v226, %v224
    %v263 = vpack.c.b16 %v229, %v227
    %v264 = vpack.c.b16 %v230, %v228
    %v265 = vpack.c.b16 %v233, %v231
    %v266 = vpack.c.b16 %v234, %v232
    %299 = vmatprep.subr.bf16.mxu0 %v236
    %300 = vmatpush1.bf16.msra.mxu0 %v235
    %301 = vmatprep.subr.bf16.mxu0 %v238
    %302 = vmatpush1.bf16.msra.mxu0 %v237
    %303 = vmatprep.subr.bf16.mxu0 %v240
    %304 = vmatpush1.bf16.msra.mxu0 %v239
    %305 = vmatprep.subr.bf16.mxu0 %v242
    %306 = vmatpush1.bf16.msra.mxu0 %v241
    %307 = vmatprep.subr.bf16.mxu0 %v244
    %308 = vmatpush1.bf16.msra.mxu0 %v243
    %309 = vmatprep.subr.bf16.mxu0 %v246
    %310 = vmatpush1.bf16.msra.mxu0 %v245
    %311 = vmatprep.subr.bf16.mxu0 %v248
    %312 = vmatpush1.bf16.msra.mxu0 %v247
    %313 = vmatprep.subr.bf16.mxu0 %v250
    %314 = vmatpush1.bf16.msra.mxu0 %v249
    %315 = vmatprep.subr.bf16.mxu0 %v252
    %316 = vmatpush1.bf16.msra.mxu0 %v251
    %317 = vmatprep.subr.bf16.mxu0 %v254
    %318 = vmatpush1.bf16.msra.mxu0 %v253
    %319 = vmatprep.subr.bf16.mxu0 %v256
    %320 = vmatpush1.bf16.msra.mxu0 %v255
    %321 = vmatprep.subr.bf16.mxu0 %v258
    %322 = vmatpush1.bf16.msra.mxu0 %v257
    %323 = vmatprep.subr.bf16.mxu0 %v260
    %324 = vmatpush1.bf16.msra.mxu0 %v259
    %325 = vmatprep.subr.bf16.mxu0 %v262
    %326 = vmatpush1.bf16.msra.mxu0 %v261
    %327 = vmatprep.subr.bf16.mxu0 %v264
    %328 = vmatpush1.bf16.msra.mxu0 %v263
    %329 = vmatprep.subr.bf16.mxu0 %v266
    %330 = vmatpush1.bf16.msra.mxu0 %v265
    %331 = vmatprep.mubr.bf16.mxu0 %v80
    %332 = vmatmul.mubr.bf16.gmra.mrb[0].mxu0 %v79
    %v333 = vpop.f32.mrb[0].mxu0
    %v334 = vadd.f32 %v132, %v333
    %v335 = vpop.f32.mrb[0].mxu0
    %v336 = vadd.f32 %v136, %v335
    %v337 = vpop.f32.mrb[0].mxu0
    %v338 = vadd.f32 %v132, %v337
    %v339 = vpop.f32.mrb[0].mxu0
    %v340 = vadd.f32 %v136, %v339
    %341 = vmatprep.mubr.bf16.mxu0 %v82
    %342 = vmatmul.mubr.bf16.gmra.mrb[0].mxu0 %v81
    %v343 = vpop.f32.mrb[0].mxu0
    %v344 = vadd.f32 %v132, %v343
    %v345 = vpop.f32.mrb[0].mxu0
    %v346 = vadd.f32 %v136, %v345
    %v347 = vpop.f32.mrb[0].mxu0
    %v348 = vadd.f32 %v132, %v347
    %v349 = vpop.f32.mrb[0].mxu0
    %v350 = vadd.f32 %v136, %v349
    %351 = vmatprep.mubr.bf16.mxu0 %v84
    %352 = vmatmul.mubr.bf16.gmra.mrb[0].mxu0 %v83
    %v353 = vpop.f32.mrb[0].mxu0
    %v354 = vadd.f32 %v132, %v353
    %v355 = vpop.f32.mrb[0].mxu0
    %v356 = vadd.f32 %v136, %v355
    %v357 = vpop.f32.mrb[0].mxu0
    %v358 = vadd.f32 %v132, %v357
    %v359 = vpop.f32.mrb[0].mxu0
    %v360 = vadd.f32 %v136, %v359
    %361 = vmatprep.mubr.bf16.mxu0 %v86
    %362 = vmatmul.mubr.bf16.gmra.mrb[0].mxu0 %v85
    %v363 = vpop.f32.mrb[0].mxu0
    %v364 = vadd.f32 %v132, %v363
    %v365 = vpop.f32.mrb[0].mxu0
    %v366 = vadd.f32 %v136, %v365
    %v367 = vpop.f32.mrb[0].mxu0
    %v368 = vadd.f32 %v132, %v367
    %v369 = vpop.f32.mrb[0].mxu0
    %v370 = vadd.f32 %v136, %v369
    %371 = vmatprep.mubr.bf16.mxu0 %v88
    %372 = vmatmul.mubr.bf16.gmra.mrb[0].mxu0 %v87
    %v373 = vpop.f32.mrb[0].mxu0
    %v374 = vadd.f32 %v132, %v373
    %v375 = vpop.f32.mrb[0].mxu0
    %v376 = vadd.f32 %v136, %v375
    %v377 = vpop.f32.mrb[0].mxu0
    %v378 = vadd.f32 %v132, %v377
    %v379 = vpop.f32.mrb[0].mxu0
    %v380 = vadd.f32 %v136, %v379
    %381 = vmatprep.mubr.bf16.mxu0 %v90
    %382 = vmatmul.mubr.bf16.gmra.mrb[0].mxu0 %v89
    %v383 = vpop.f32.mrb[0].mxu0
    %v384 = vadd.f32 %v132, %v383
    %v385 = vpop.f32.mrb[0].mxu0
    %v386 = vadd.f32 %v136, %v385
    %v387 = vpop.f32.mrb[0].mxu0
    %v388 = vadd.f32 %v132, %v387
    %v389 = vpop.f32.mrb[0].mxu0
    %v390 = vadd.f32 %v136, %v389
    %391 = vmatprep.mubr.bf16.mxu0 %v92
    %392 = vmatmul.mubr.bf16.gmra.mrb[0].mxu0 %v91
    %v393 = vpop.f32.mrb[0].mxu0
    %v394 = vadd.f32 %v132, %v393
    %v395 = vpop.f32.mrb[0].mxu0
    %v396 = vadd.f32 %v136, %v395
    %v397 = vpop.f32.mrb[0].mxu0
    %v398 = vadd.f32 %v132, %v397
    %v399 = vpop.f32.mrb[0].mxu0
    %v400 = vadd.f32 %v136, %v399
    %401 = vmatprep.mubr.bf16.mxu0 %v94
    %402 = vmatmul.mubr.bf16.gmra.mrb[0].mxu0 %v93
    %v403 = vpop.f32.mrb[0].mxu0
    %v404 = vadd.f32 %v132, %v403
    %v405 = vpop.f32.mrb[0].mxu0
    %v406 = vadd.f32 %v136, %v405
    %v407 = vpop.f32.mrb[0].mxu0
    %v408 = vadd.f32 %v132, %v407
    %v409 = vpop.f32.mrb[0].mxu0
    %v410 = vadd.f32 %v136, %v409
    %411 = vdwg.mxu0
    %v412 = vmax.f32 %v334, 0.0
    %v413 = vmax.f32 %v336, 0.0
    %v414 = vmax.f32 %v338, 0.0
    %v415 = vmax.f32 %v340, 0.0
    %v416 = vmax.f32 %v344, 0.0
    %v417 = vmax.f32 %v346, 0.0
    %v418 = vmax.f32 %v348, 0.0
    %v419 = vmax.f32 %v350, 0.0
    %v420 = vmax.f32 %v354, 0.0
    %v421 = vmax.f32 %v356, 0.0
    %v422 = vmax.f32 %v358, 0.0
    %v423 = vmax.f32 %v360, 0.0
    %v424 = vmax.f32 %v364, 0.0
    %v425 = vmax.f32 %v366, 0.0
    %v426 = vmax.f32 %v368, 0.0
    %v427 = vmax.f32 %v370, 0.0
    %v428 = vmax.f32 %v374, 0.0
    %v429 = vmax.f32 %v376, 0.0
    %v430 = vmax.f32 %v378, 0.0
    %v431 = vmax.f32 %v380, 0.0
    %v432 = vmax.f32 %v384, 0.0
    %v433 = vmax.f32 %v386, 0.0
    %v434 = vmax.f32 %v388, 0.0
    %v435 = vmax.f32 %v390, 0.0
    %v436 = vmax.f32 %v394, 0.0
    %v437 = vmax.f32 %v396, 0.0
    %v438 = vmax.f32 %v398, 0.0
    %v439 = vmax.f32 %v400, 0.0
    %v440 = vmax.f32 %v404, 0.0
    %v441 = vmax.f32 %v406, 0.0
    %v442 = vmax.f32 %v408, 0.0
    %v443 = vmax.f32 %v410, 0.0
    %444 = vst [vmem:[#allocation2] sm:$0xff] %v412
    %445 = vst [vmem:[#allocation2 + $0x8] sm:$0xff] %v413
    %446 = vst [vmem:[#allocation2 + $0x10] sm:$0xff] %v414
    %447 = vst [vmem:[#allocation2 + $0x18] sm:$0xff] %v415
    %448 = vst [vmem:[#allocation2 + $0x20] sm:$0xff] %v416
    %449 = vst [vmem:[#allocation2 + $0x28] sm:$0xff] %v417
    %450 = vst [vmem:[#allocation2 + $0x30] sm:$0xff] %v418
    %451 = vst [vmem:[#allocation2 + $0x38] sm:$0xff] %v419
    %452 = vst [vmem:[#allocation2 + $0x40] sm:$0xff] %v420
    %453 = vst [vmem:[#allocation2 + $0x48] sm:$0xff] %v421
    %454 = vst [vmem:[#allocation2 + $0x50] sm:$0xff] %v422
    %455 = vst [vmem:[#allocation2 + $0x58] sm:$0xff] %v423
    %456 = vst [vmem:[#allocation2 + $0x60] sm:$0xff] %v424
    %457 = vst [vmem:[#allocation2 + $0x68] sm:$0xff] %v425
    %458 = vst [vmem:[#allocation2 + $0x70] sm:$0xff] %v426
    %459 = vst [vmem:[#allocation2 + $0x78] sm:$0xff] %v427
    %460 = vst [vmem:[#allocation2 + $0x80] sm:$0xff] %v428
    %461 = vst [vmem:[#allocation2 + $0x88] sm:$0xff] %v429
    %462 = vst [vmem:[#allocation2 + $0x90] sm:$0xff] %v430
    %463 = vst [vmem:[#allocation2 + $0x98] sm:$0xff] %v431
    %464 = vst [vmem:[#allocation2 + $0xa0] sm:$0xff] %v432
    %465 = vst [vmem:[#allocation2 + $0xa8] sm:$0xff] %v433
    %466 = vst [vmem:[#allocation2 + $0xb0] sm:$0xff] %v434
    %467 = vst [vmem:[#allocation2 + $0xb8] sm:$0xff] %v435
    %468 = vst [vmem:[#allocation2 + $0xc0] sm:$0xff] %v436
    %469 = vst [vmem:[#allocation2 + $0xc8] sm:$0xff] %v437
    %470 = vst [vmem:[#allocation2 + $0xd0] sm:$0xff] %v438
    %471 = vst [vmem:[#allocation2 + $0xd8] sm:$0xff] %v439
    %472 = vst [vmem:[#allocation2 + $0xe0] sm:$0xff] %v440
    %473 = vst [vmem:[#allocation2 + $0xe8] sm:$0xff] %v441
    %474 = vst [vmem:[#allocation2 + $0xf0] sm:$0xff] %v442
    %475 = vst [vmem:[#allocation2 + $0xf8] sm:$0xff] %v443
    // Predicated region
    $region14: #{_lambda_.1} parent=1 // pred_check
      _
    $region15: #{_lambda_.1} parent=1 // pred_check_branch
      %477 = sbr.rel (0) target = $region17
    $region16: #{_lambda_.1} parent=1 // pred_region
      %s479 = ssub.s32 4096, 4096
      %480 = vsyncadd [#allocation3], %s479
      %s481 = sshll.u32 [#allocation2], 4
      %s482 = int_to_ptr.vmem [resolvable:$true] %s481
      %487 = dma.vmem_to_hbm [thread:$0]  %s482, 4096, %s3, [#allocation3], 256, 256, 16
    $region17: #{_lambda_.1} parent=1 // pred_fallthru
      _
    // Predicated region
    $region18: #{_lambda_.1} parent=1 // pred_check
      _
    $region19: #{_lambda_.1} parent=1 // pred_check_branch
      %489 = sbr.rel (0) target = $region21
    $region20: #{_lambda_.1} parent=1 // pred_region
      %490 = dma.done [#allocation3], 4096
    $region21: #{_lambda_.1} parent=1 // pred_fallthru
      _
    %491 = vsyncpa [#allocation3], 1

</llo_original>
